<compile_context>
chip_gen: v5e
topology: v5e:2x2
jax: 0.10.0
libtpu: 0.0.40
codegen_flags: <defaults>
</compile_context>

<pallas_src>
import functools

import jax
import jax.numpy as jnp
from jax.experimental import pallas as pl
from jax.experimental.pallas import tpu as pltpu


# -----------------------------------------------------------------------------
# Kernel 1: projection + attention-score terms, executed ONCE per layer over
# node-row tiles (hoisted out of the destination-row grid).
#   feat_ref   [tile, H*D]  bf16   fc projection (f32 MXU accumulation)
#   scores_ref [tile, 2H]   f32    columns [0:H) = el, [H:2H) = er
# -----------------------------------------------------------------------------
def _gat_project_kernel(x_ref, w_ref, a_ref, feat_ref, scores_ref):
    feat = jnp.dot(x_ref[...], w_ref[...], preferred_element_type=jnp.float32)
    feat_b = feat.astype(jnp.bfloat16)
    feat_ref[...] = feat_b
    scores_ref[...] = jnp.dot(feat_b, a_ref[...],
                              preferred_element_type=jnp.float32)


# -----------------------------------------------------------------------------
# Kernel 2: masked softmax + aggregation over destination-row tiles.
#   adj_ref  [TQ, N]  int8 {0,1}     dst-row tile of the dense adjacency
#   feat_ref [N, H*D] bf16           all source features (grid-invariant)
#   elt_ref  [H, N]   f32            source attention terms (grid-invariant)
#   er_ref   [TQ, H]  f32            destination attention terms for the tile
#   b_ref    [1, out_w] f32          bias (pre-flattened / pre-reduced)
#   o_ref    [TQ, out_w]             lane-dense output tile
# -----------------------------------------------------------------------------
def _gat_attend_kernel(adj_ref, feat_ref, elt_ref, er_ref, b_ref, o_ref, *,
                       num_heads, out_dim, negative_slope, mean_heads):
    adj_f = adj_ref[...].astype(jnp.float32)            # [TQ, N] in {0, 1}
    neg_bias = (adj_f - 1.0) * jnp.float32(1e9)         # 0 on edges, -1e9 off
    feat = feat_ref[...]                                # [N, H*D] bf16
    elt = elt_ref[...]                                  # [H, N]  f32
    er = er_ref[...]                                    # [TQ, H] f32

    aggs = []
    for h in range(num_heads):                          # static; H is small
        lo = h * out_dim
        e = er[:, h:h + 1] + elt[h:h + 1, :]            # [TQ, N]
        e = jnp.where(e > 0, e, negative_slope * e)     # LeakyReLU
        e = e + neg_bias                                # mask BEFORE the max
        m = jnp.max(e, axis=-1, keepdims=True)          # max over edges only
        # TODO(synk): bf16 exp on v6e/v7x would double EUP throughput.
        p = jnp.exp(e - m) * adj_f
        denom = jnp.sum(p, axis=-1, keepdims=True)
        denom = jnp.maximum(denom, jnp.float32(1e-30))  # isolated dst -> 0 agg
        alpha = p / denom                               # exact normalization
        aggs.append(jnp.dot(alpha.astype(jnp.bfloat16),
                            feat[:, lo:lo + out_dim],
                            preferred_element_type=jnp.float32))   # [TQ, D]

    if mean_heads:
        acc = aggs[0]
        for a in aggs[1:]:
            acc = acc + a
        out = acc * jnp.float32(1.0 / num_heads) + b_ref[...]      # [TQ, C]
    else:
        # One lane-dense store of the whole [TQ, H*D] slab (== .flatten(1)).
        out = jnp.concatenate(aggs, axis=-1) + b_ref[...]
    o_ref[...] = out.astype(o_ref.dtype)


# -----------------------------------------------------------------------------
# One GAT layer = projection pallas_call + attention/aggregation pallas_call.
# -----------------------------------------------------------------------------
def gat_layer(h, adj, w_b, a_b, bias2, *, num_heads, out_dim, negative_slope,
              mean_heads, row_tile=256):
    n, fin = h.shape
    hd = num_heads * out_dim
    out_w = out_dim if mean_heads else hd
    tile = n if n <= row_tile else row_tile
    grid_r = pl.cdiv(n, tile)

    vmem_limit = 48 * 1024 * 1024   # explicit: v5e default scoped VMEM is 16 MiB

    # ---- (1) projection + score terms, once over node-row tiles ----
    proj_cost = pl.CostEstimate(
        flops=int(2 * n * fin * hd + 2 * n * hd * 2 * num_heads),
        transcendentals=0,
        bytes_accessed=int(2 * (n * fin + fin * hd + hd * 2 * num_heads + n * hd)
                           + 4 * n * 2 * num_heads),
    )
    feat, scores = pl.pallas_call(
        _gat_project_kernel,
        out_shape=(jax.ShapeDtypeStruct((n, hd), jnp.bfloat16),
                   jax.ShapeDtypeStruct((n, 2 * num_heads), jnp.float32)),
        grid=(grid_r,),
        in_specs=[
            pl.BlockSpec((tile, fin), lambda r: (r, 0)),            # x (bf16)
            pl.BlockSpec((fin, hd), lambda r: (0, 0)),              # W (bf16)
            pl.BlockSpec((hd, 2 * num_heads), lambda r: (0, 0)),    # [A_l | A_r]
        ],
        out_specs=(pl.BlockSpec((tile, hd), lambda r: (r, 0)),
                   pl.BlockSpec((tile, 2 * num_heads), lambda r: (r, 0))),
        compiler_params=pltpu.CompilerParams(
            dimension_semantics=("parallel",),
            vmem_limit_bytes=vmem_limit),
        cost_estimate=proj_cost,
    )(h, w_b, a_b)

    el_t = scores[:, :num_heads].T       # [H, N] — tiny XLA transpose, once
    er = scores[:, num_heads:]           # [N, H]

    # ---- (2) attention + aggregation over destination-row tiles ----
    kernel = functools.partial(
        _gat_attend_kernel, num_heads=num_heads, out_dim=out_dim,
        negative_slope=negative_slope, mean_heads=mean_heads)

    attend_cost = pl.CostEstimate(
        flops=int(2 * num_heads * n * n * out_dim + 10 * num_heads * n * n),
        transcendentals=int(num_heads * n * n),
        bytes_accessed=int(adj.size + 2 * n * hd + 8 * n * num_heads
                           + n * out_w * (4 if mean_heads else 2)),
    )

    out_dtype = jnp.float32 if mean_heads else jnp.bfloat16
    return pl.pallas_call(
        kernel,
        out_shape=jax.ShapeDtypeStruct((n, out_w), out_dtype),
        grid=(grid_r,),
        in_specs=[
            pl.BlockSpec((tile, n), lambda r: (r, 0)),              # adj int8 tile
            pl.BlockSpec((n, hd), lambda r: (0, 0)),                # feat (bf16, resident)
            pl.BlockSpec((num_heads, n), lambda r: (0, 0)),         # el^T (resident)
            pl.BlockSpec((tile, num_heads), lambda r: (r, 0)),      # er dst rows
            pl.BlockSpec((1, out_w), lambda r: (0, 0)),             # bias (pre-reduced)
        ],
        out_specs=pl.BlockSpec((tile, out_w), lambda r: (r, 0)),
        compiler_params=pltpu.CompilerParams(
            dimension_semantics=("parallel",),
            vmem_limit_bytes=vmem_limit),
        cost_estimate=attend_cost,
    )(adj, feat, el_t, er, bias2)


# -----------------------------------------------------------------------------
# Per-layer constant prep: bf16 weight, block-structured score matrix
# [A_l | A_r] (so el/er come out of one small matmul), pre-reduced bias.
# -----------------------------------------------------------------------------
def prepare_gat_layer(params, mean_heads):
    w, attn_l, attn_r, bias = params
    num_heads, out_dim = attn_l.shape
    eye = jnp.eye(num_heads, dtype=jnp.float32)
    a_l = (attn_l[:, :, None] * eye[:, None, :]).reshape(num_heads * out_dim, num_heads)
    a_r = (attn_r[:, :, None] * eye[:, None, :]).reshape(num_heads * out_dim, num_heads)
    a_b = jnp.concatenate([a_l, a_r], axis=1).astype(jnp.bfloat16)
    w_b = w.astype(jnp.bfloat16)
    if mean_heads:
        # mean over heads of (agg_h + bias_h) == mean(agg_h) + mean(bias_h)
        bias2 = bias.reshape(num_heads, out_dim).mean(axis=0, keepdims=True)
    else:
        bias2 = bias.reshape(1, num_heads * out_dim)
    return w_b, a_b, bias2, num_heads, out_dim


# -----------------------------------------------------------------------------
# Net forward: hidden GATConv layers (lane-dense flatten of heads), then final
# GATConv with mean over heads.
# -----------------------------------------------------------------------------
def net_forward(x, layer_params, adj, negative_slope=0.2, row_tile=256):
    h = x.astype(jnp.bfloat16)
    for params in layer_params[:-1]:
        w_b, a_b, b2, num_heads, out_dim = prepare_gat_layer(params, False)
        h = gat_layer(h, adj, w_b, a_b, b2, num_heads=num_heads,
                      out_dim=out_dim, negative_slope=negative_slope,
                      mean_heads=False, row_tile=row_tile)
    w_b, a_b, b2, num_heads, out_dim = prepare_gat_layer(layer_params[-1], True)
    logits = gat_layer(h, adj, w_b, a_b, b2, num_heads=num_heads,
                       out_dim=out_dim, negative_slope=negative_slope,
                       mean_heads=True, row_tile=row_tile)
    return logits


# -----------------------------------------------------------------------------
# Pure-JAX reference (f32) for validation.
# -----------------------------------------------------------------------------
def _gat_layer_ref(h, adj, params, negative_slope, mean_heads):
    w, attn_l, attn_r, bias = params
    num_heads, out_dim = attn_l.shape
    n = h.shape[0]
    feat = (h @ w).reshape(n, num_heads, out_dim)
    el = jnp.einsum('nhd,hd->nh', feat, attn_l)
    er = jnp.einsum('nhd,hd->nh', feat, attn_r)
    e = er[:, None, :] + el[None, :, :]                  # [dst, src, H]
    e = jnp.where(e > 0, e, negative_slope * e)
    mask = adj.astype(bool)[:, :, None]
    e = jnp.where(mask, e, -jnp.inf)
    alpha = jax.nn.softmax(e, axis=1)
    alpha = jnp.where(mask, alpha, 0.0)                  # isolated rows -> 0
    out = jnp.einsum('vuh,uhd->vhd', alpha, feat) + bias.reshape(num_heads, out_dim)
    if mean_heads:
        return out.mean(axis=1)
    return out.reshape(n, num_heads * out_dim)


def net_forward_ref(x, layer_params, adj, negative_slope=0.2):
    h = x
    for params in layer_params[:-1]:
        h = _gat_layer_ref(h, adj, params, negative_slope, False)
    return _gat_layer_ref(h, adj, layer_params[-1], negative_slope, True)


# -----------------------------------------------------------------------------
# Deterministic parameter init (Xavier-normal, gain=sqrt(2), as in DGL GATConv).
# -----------------------------------------------------------------------------
def init_gat_params(key, in_dim, out_dim, num_heads):
    k1, k2, k3 = jax.random.split(key, 3)
    gain = jnp.sqrt(2.0)
    std_w = gain * jnp.sqrt(2.0 / (in_dim + num_heads * out_dim))
    w = std_w * jax.random.normal(k1, (in_dim, num_heads * out_dim), jnp.float32)
    std_a = gain * jnp.sqrt(2.0 / (1.0 + out_dim))
    attn_l = std_a * jax.random.normal(k2, (num_heads, out_dim), jnp.float32)
    attn_r = std_a * jax.random.normal(k3, (num_heads, out_dim), jnp.float32)
    bias = jnp.zeros((num_heads * out_dim,), jnp.float32)
    return (w, attn_l, attn_r, bias)


if __name__ == "__main__":
    # Small synthetic config consistent with the module's constructor.
    num_nodes = 16
    in_dim = 8
    num_hidden = 16
    num_classes = 4
    heads = [2, 2]
    negative_slope = 0.2

    key = jax.random.PRNGKey(0)
    kx, kp0, kp1 = jax.random.split(key, 3)

    # Deterministic synthetic graph: ring (both directions) + self loops, as a
    # dense int8 adjacency adj[dst, src].
    idx = jnp.arange(num_nodes)
    adj = jnp.zeros((num_nodes, num_nodes), jnp.int8)
    adj = adj.at[idx, idx].set(1)
    adj = adj.at[idx, (idx + 1) % num_nodes].set(1)
    adj = adj.at[idx, (idx - 1) % num_nodes].set(1)

    # Parameters: layer 0 (in_dim -> hidden, heads[0]); final (hidden*heads[0]
    # -> classes, heads[1]).
    layer_params = [
        init_gat_params(kp0, in_dim, num_hidden, heads[0]),
        init_gat_params(kp1, num_hidden * heads[0], num_classes, heads[1]),
    ]

    x = jax.random.normal(kx, (num_nodes, in_dim), jnp.float32)

    fwd = jax.jit(functools.partial(net_forward, negative_slope=negative_slope))
    logits = jax.block_until_ready(fwd(x, layer_params, adj))

    assert logits.shape == (num_nodes, num_classes), logits.shape
    assert bool(jnp.all(jnp.isfinite(logits)))

    # Validate against the f32 pure-JAX reference (bf16 matmul tolerance).
    ref = net_forward_ref(x, layer_params, adj, negative_slope)
    max_err = float(jnp.max(jnp.abs(logits - ref)))
    assert max_err < 1e-1, f"max |pallas - ref| = {max_err}"

    print("KERNEL_OK")
</pallas_src>

<mosaic_0001>
module attributes {stable_mosaic.version = 11 : i64} {
  func.func @_gat_project_kernel(%arg0: i32, %arg1: memref<16x8xbf16, #tpu.memory_space<vmem>>, %arg2: memref<8x32xbf16, #tpu.memory_space<vmem>>, %arg3: memref<32x4xbf16, #tpu.memory_space<vmem>>, %arg4: memref<16x32xbf16, #tpu.memory_space<vmem>>, %arg5: memref<16x4xf32, #tpu.memory_space<vmem>>) attributes {dimension_semantics = [#tpu.dimension_semantics<parallel>], iteration_bounds = array<i64: 1>, scalar_prefetch = 0 : i64, scratch_operands = 0 : i64, tpu.core_type = #tpu.core_type<tc>, window_params = [{transform_indices = @transform_0, window_bounds = array<i64: 16, 8>}, {pipeline_mode = #tpu.pipeline_mode<synchronous>, transform_indices = @transform_1, window_bounds = array<i64: 8, 32>}, {pipeline_mode = #tpu.pipeline_mode<synchronous>, transform_indices = @transform_2, window_bounds = array<i64: 32, 4>}, {transform_indices = @transform_3, window_bounds = array<i64: 16, 32>}, {transform_indices = @transform_4, window_bounds = array<i64: 16, 4>}]} {
    %c0 = arith.constant 0 : index
    %c0_0 = arith.constant 0 : index
    %0 = vector.load %arg1[%c0, %c0_0] : memref<16x8xbf16, #tpu.memory_space<vmem>>, vector<16x8xbf16>
    %c0_1 = arith.constant 0 : index
    %c0_2 = arith.constant 0 : index
    %1 = vector.load %arg2[%c0_1, %c0_2] : memref<8x32xbf16, #tpu.memory_space<vmem>>, vector<8x32xbf16>
    %cst = arith.constant dense<0.000000e+00> : vector<16x32xf32>
    %2 = tpu.matmul %0, %1, %cst {dimension_numbers = #tpu.dot_dimension_numbers<[1], [0], [0], [1], [0, 0, 1, 1], [], []>} : vector<16x8xbf16>, vector<8x32xbf16>, vector<16x32xf32> -> vector<16x32xf32>
    %3 = arith.truncf %2 : vector<16x32xf32> to vector<16x32xbf16>
    %c0_3 = arith.constant 0 : index
    %c0_4 = arith.constant 0 : index
    %4 = vector.load %arg4[%c0_3, %c0_4] : memref<16x32xbf16, #tpu.memory_space<vmem>>, vector<16x32xbf16>
    tpu.vector_store %arg4[%c0_3, %c0_4], %3 {strides = array<i32>} : memref<16x32xbf16, #tpu.memory_space<vmem>>, vector<16x32xbf16>,
    %c0_5 = arith.constant 0 : index
    %c0_6 = arith.constant 0 : index
    %5 = vector.load %arg3[%c0_5, %c0_6] : memref<32x4xbf16, #tpu.memory_space<vmem>>, vector<32x4xbf16>
    %cst_7 = arith.constant dense<0.000000e+00> : vector<16x4xf32>
    %6 = tpu.matmul %3, %5, %cst_7 {dimension_numbers = #tpu.dot_dimension_numbers<[1], [0], [0], [1], [0, 0, 1, 1], [], []>} : vector<16x32xbf16>, vector<32x4xbf16>, vector<16x4xf32> -> vector<16x4xf32>
    %c0_8 = arith.constant 0 : index
    %c0_9 = arith.constant 0 : index
    %7 = vector.load %arg5[%c0_8, %c0_9] : memref<16x4xf32, #tpu.memory_space<vmem>>, vector<16x4xf32>
    tpu.vector_store %arg5[%c0_8, %c0_9], %6 {strides = array<i32>} : memref<16x4xf32, #tpu.memory_space<vmem>>, vector<16x4xf32>,
    return
  }
  func.func @transform_0(%arg0: i32) -> (i32, i32) {
    %c0_i32 = arith.constant 0 : i32
    %c0_i32_0 = arith.constant 0 : i32
    return %arg0, %c0_i32 : i32, i32
  }
  func.func @transform_1(%arg0: i32) -> (i32, i32) {
    %c0_i32 = arith.constant 0 : i32
    %c0_i32_0 = arith.constant 0 : i32
    %c0_i32_1 = arith.constant 0 : i32
    return %c0_i32, %c0_i32_0 : i32, i32
  }
  func.func @transform_2(%arg0: i32) -> (i32, i32) {
    %c0_i32 = arith.constant 0 : i32
    %c0_i32_0 = arith.constant 0 : i32
    %c0_i32_1 = arith.constant 0 : i32
    return %c0_i32, %c0_i32_0 : i32, i32
  }
  func.func @transform_3(%arg0: i32) -> (i32, i32) {
    %c0_i32 = arith.constant 0 : i32
    %c0_i32_0 = arith.constant 0 : i32
    return %arg0, %c0_i32 : i32, i32
  }
  func.func @transform_4(%arg0: i32) -> (i32, i32) {
    %c0_i32 = arith.constant 0 : i32
    %c0_i32_0 = arith.constant 0 : i32
    return %arg0, %c0_i32 : i32, i32
  }
}

module attributes {stable_mosaic.version = 11 : i64} {
  func.func @_gat_attend_kernel(%arg0: i32, %arg1: memref<16x16xi8, #tpu.memory_space<vmem>>, %arg2: memref<16x32xbf16, #tpu.memory_space<vmem>>, %arg3: memref<2x16xf32, #tpu.memory_space<vmem>>, %arg4: memref<16x2xf32, #tpu.memory_space<vmem>>, %arg5: memref<1x32xf32, #tpu.memory_space<vmem>>, %arg6: memref<16x32xbf16, #tpu.memory_space<vmem>>) attributes {dimension_semantics = [#tpu.dimension_semantics<parallel>], iteration_bounds = array<i64: 1>, scalar_prefetch = 0 : i64, scratch_operands = 0 : i64, tpu.core_type = #tpu.core_type<tc>, window_params = [{transform_indices = @transform_0, window_bounds = array<i64: 16, 16>}, {pipeline_mode = #tpu.pipeline_mode<synchronous>, transform_indices = @transform_1, window_bounds = array<i64: 16, 32>}, {pipeline_mode = #tpu.pipeline_mode<synchronous>, transform_indices = @transform_2, window_bounds = array<i64: 2, 16>}, {transform_indices = @transform_3, window_bounds = array<i64: 16, 2>}, {pipeline_mode = #tpu.pipeline_mode<synchronous>, transform_indices = @transform_4, window_bounds = array<i64: 1, 32>}, {transform_indices = @transform_5, window_bounds = array<i64: 16, 32>}]} {
    %c0 = arith.constant 0 : index
    %c0_0 = arith.constant 0 : index
    %0 = vector.load %arg1[%c0, %c0_0] : memref<16x16xi8, #tpu.memory_space<vmem>>, vector<16x16xi8>
    %1 = arith.sitofp %0 : vector<16x16xi8> to vector<16x16xf32>
    %cst = arith.constant 1.000000e+00 : f32
    %2 = vector.broadcast %cst : f32 to vector<16x16xf32>
    %3 = arith.subf %1, %2 : vector<16x16xf32>
    %cst_1 = arith.constant 1.000000e+09 : f32
    %4 = vector.broadcast %cst_1 : f32 to vector<16x16xf32>
    %5 = arith.mulf %3, %4 : vector<16x16xf32>
    %c0_2 = arith.constant 0 : index
    %c0_3 = arith.constant 0 : index
    %6 = vector.load %arg2[%c0_2, %c0_3] : memref<16x32xbf16, #tpu.memory_space<vmem>>, vector<16x32xbf16>
    %c0_4 = arith.constant 0 : index
    %c0_5 = arith.constant 0 : index
    %7 = vector.load %arg3[%c0_4, %c0_5] : memref<2x16xf32, #tpu.memory_space<vmem>>, vector<2x16xf32>
    %c0_6 = arith.constant 0 : index
    %c0_7 = arith.constant 0 : index
    %8 = vector.load %arg4[%c0_6, %c0_7] : memref<16x2xf32, #tpu.memory_space<vmem>>, vector<16x2xf32>
    %9 = vector.extract_strided_slice %8 {offsets = [0, 0], sizes = [16, 1], strides = [1, 1]} : vector<16x2xf32> to vector<16x1xf32>
    %10 = vector.extract_strided_slice %7 {offsets = [0, 0], sizes = [1, 16], strides = [1, 1]} : vector<2x16xf32> to vector<1x16xf32>
    %11 = vector.broadcast %9 : vector<16x1xf32> to vector<16x16xf32>
    %12 = vector.broadcast %10 : vector<1x16xf32> to vector<16x16xf32>
    %13 = arith.addf %11, %12 : vector<16x16xf32>
    %cst_8 = arith.constant 0.000000e+00 : f32
    %14 = vector.broadcast %cst_8 : f32 to vector<16x16xf32>
    %15 = arith.cmpf ogt, %13, %14 : vector<16x16xf32>
    %cst_9 = arith.constant 2.000000e-01 : f32
    %16 = vector.broadcast %cst_9 : f32 to vector<16x16xf32>
    %17 = arith.mulf %16, %13 : vector<16x16xf32>
    %18 = arith.select %15, %13, %17 : vector<16x16xi1>, vector<16x16xf32>
    %19 = arith.addf %18, %5 : vector<16x16xf32>
    %cst_10 = arith.constant dense<0xFF800000> : vector<16xf32>
    %20 = vector.multi_reduction <maximumf>, %19, %cst_10 [1] : vector<16x16xf32> to vector<16xf32>
    %21 = vector.shape_cast %20 : vector<16xf32> to vector<16x1xf32>
    %22 = vector.broadcast %21 : vector<16x1xf32> to vector<16x16xf32>
    %23 = arith.subf %19, %22 : vector<16x16xf32>
    %24 = math.exp %23 : vector<16x16xf32>
    %25 = arith.mulf %24, %1 : vector<16x16xf32>
    %cst_11 = arith.constant dense<0.000000e+00> : vector<16xf32>
    %26 = vector.multi_reduction <add>, %25, %cst_11 [1] : vector<16x16xf32> to vector<16xf32>
    %27 = vector.shape_cast %26 : vector<16xf32> to vector<16x1xf32>
    %cst_12 = arith.constant 1.000000e-30 : f32
    %28 = vector.broadcast %cst_12 : f32 to vector<16x1xf32>
    %29 = arith.maximumf %27, %28 : vector<16x1xf32>
    %30 = vector.broadcast %29 : vector<16x1xf32> to vector<16x16xf32>
    %31 = arith.divf %25, %30 : vector<16x16xf32>
    %32 = arith.truncf %31 : vector<16x16xf32> to vector<16x16xbf16>
    %33 = vector.extract_strided_slice %6 {offsets = [0, 0], sizes = [16, 16], strides = [1, 1]} : vector<16x32xbf16> to vector<16x16xbf16>
    %cst_13 = arith.constant dense<0.000000e+00> : vector<16x16xf32>
    %34 = tpu.matmul %32, %33, %cst_13 {dimension_numbers = #tpu.dot_dimension_numbers<[1], [0], [0], [1], [0, 0, 1, 1], [], []>} : vector<16x16xbf16>, vector<16x16xbf16>, vector<16x16xf32> -> vector<16x16xf32>
    %35 = vector.extract_strided_slice %8 {offsets = [0, 1], sizes = [16, 1], strides = [1, 1]} : vector<16x2xf32> to vector<16x1xf32>
    %36 = vector.extract_strided_slice %7 {offsets = [1, 0], sizes = [1, 16], strides = [1, 1]} : vector<2x16xf32> to vector<1x16xf32>
    %37 = vector.broadcast %35 : vector<16x1xf32> to vector<16x16xf32>
    %38 = vector.broadcast %36 : vector<1x16xf32> to vector<16x16xf32>
    %39 = arith.addf %37, %38 : vector<16x16xf32>
    %cst_14 = arith.constant 0.000000e+00 : f32
    %40 = vector.broadcast %cst_14 : f32 to vector<16x16xf32>
    %41 = arith.cmpf ogt, %39, %40 : vector<16x16xf32>
    %cst_15 = arith.constant 2.000000e-01 : f32
    %42 = vector.broadcast %cst_15 : f32 to vector<16x16xf32>
    %43 = arith.mulf %42, %39 : vector<16x16xf32>
    %44 = arith.select %41, %39, %43 : vector<16x16xi1>, vector<16x16xf32>
    %45 = arith.addf %44, %5 : vector<16x16xf32>
    %cst_16 = arith.constant dense<0xFF800000> : vector<16xf32>
    %46 = vector.multi_reduction <maximumf>, %45, %cst_16 [1] : vector<16x16xf32> to vector<16xf32>
    %47 = vector.shape_cast %46 : vector<16xf32> to vector<16x1xf32>
    %48 = vector.broadcast %47 : vector<16x1xf32> to vector<16x16xf32>
    %49 = arith.subf %45, %48 : vector<16x16xf32>
    %50 = math.exp %49 : vector<16x16xf32>
    %51 = arith.mulf %50, %1 : vector<16x16xf32>
    %cst_17 = arith.constant dense<0.000000e+00> : vector<16xf32>
    %52 = vector.multi_reduction <add>, %51, %cst_17 [1] : vector<16x16xf32> to vector<16xf32>
    %53 = vector.shape_cast %52 : vector<16xf32> to vector<16x1xf32>
    %cst_18 = arith.constant 1.000000e-30 : f32
    %54 = vector.broadcast %cst_18 : f32 to vector<16x1xf32>
    %55 = arith.maximumf %53, %54 : vector<16x1xf32>
    %56 = vector.broadcast %55 : vector<16x1xf32> to vector<16x16xf32>
    %57 = arith.divf %51, %56 : vector<16x16xf32>
    %58 = arith.truncf %57 : vector<16x16xf32> to vector<16x16xbf16>
    %59 = vector.extract_strided_slice %6 {offsets = [0, 16], sizes = [16, 16], strides = [1, 1]} : vector<16x32xbf16> to vector<16x16xbf16>
    %cst_19 = arith.constant dense<0.000000e+00> : vector<16x16xf32>
    %60 = tpu.matmul %58, %59, %cst_19 {dimension_numbers = #tpu.dot_dimension_numbers<[1], [0], [0], [1], [0, 0, 1, 1], [], []>} : vector<16x16xbf16>, vector<16x16xbf16>, vector<16x16xf32> -> vector<16x16xf32>
    %61 = tpu.concatenate %34, %60 in 1 : vector<16x16xf32>, vector<16x16xf32> -> vector<16x32xf32>
    %c0_20 = arith.constant 0 : index
    %c0_21 = arith.constant 0 : index
    %62 = vector.load %arg5[%c0_20, %c0_21] : memref<1x32xf32, #tpu.memory_space<vmem>>, vector<1x32xf32>
    %63 = vector.broadcast %62 : vector<1x32xf32> to vector<16x32xf32>
    %64 = arith.addf %61, %63 : vector<16x32xf32>
    %65 = arith.truncf %64 : vector<16x32xf32> to vector<16x32xbf16>
    %c0_22 = arith.constant 0 : index
    %c0_23 = arith.constant 0 : index
    %66 = vector.load %arg6[%c0_22, %c0_23] : memref<16x32xbf16, #tpu.memory_space<vmem>>, vector<16x32xbf16>
    tpu.vector_store %arg6[%c0_22, %c0_23], %65 {strides = array<i32>} : memref<16x32xbf16, #tpu.memory_space<vmem>>, vector<16x32xbf16>,
    return
  }
  func.func @transform_0(%arg0: i32) -> (i32, i32) {
    %c0_i32 = arith.constant 0 : i32
    %c0_i32_0 = arith.constant 0 : i32
    return %arg0, %c0_i32 : i32, i32
  }
  func.func @transform_1(%arg0: i32) -> (i32, i32) {
    %c0_i32 = arith.constant 0 : i32
    %c0_i32_0 = arith.constant 0 : i32
    %c0_i32_1 = arith.constant 0 : i32
    return %c0_i32, %c0_i32_0 : i32, i32
  }
  func.func @transform_2(%arg0: i32) -> (i32, i32) {
    %c0_i32 = arith.constant 0 : i32
    %c0_i32_0 = arith.constant 0 : i32
    %c0_i32_1 = arith.constant 0 : i32
    return %c0_i32, %c0_i32_0 : i32, i32
  }
  func.func @transform_3(%arg0: i32) -> (i32, i32) {
    %c0_i32 = arith.constant 0 : i32
    %c0_i32_0 = arith.constant 0 : i32
    return %arg0, %c0_i32 : i32, i32
  }
  func.func @transform_4(%arg0: i32) -> (i32, i32) {
    %c0_i32 = arith.constant 0 : i32
    %c0_i32_0 = arith.constant 0 : i32
    %c0_i32_1 = arith.constant 0 : i32
    return %c0_i32, %c0_i32_0 : i32, i32
  }
  func.func @transform_5(%arg0: i32) -> (i32, i32) {
    %c0_i32 = arith.constant 0 : i32
    %c0_i32_0 = arith.constant 0 : i32
    return %arg0, %c0_i32 : i32, i32
  }
}

module attributes {stable_mosaic.version = 11 : i64} {
  func.func @_gat_project_kernel(%arg0: i32, %arg1: memref<16x32xbf16, #tpu.memory_space<vmem>>, %arg2: memref<32x8xbf16, #tpu.memory_space<vmem>>, %arg3: memref<8x4xbf16, #tpu.memory_space<vmem>>, %arg4: memref<16x8xbf16, #tpu.memory_space<vmem>>, %arg5: memref<16x4xf32, #tpu.memory_space<vmem>>) attributes {dimension_semantics = [#tpu.dimension_semantics<parallel>], iteration_bounds = array<i64: 1>, scalar_prefetch = 0 : i64, scratch_operands = 0 : i64, tpu.core_type = #tpu.core_type<tc>, window_params = [{transform_indices = @transform_0, window_bounds = array<i64: 16, 32>}, {pipeline_mode = #tpu.pipeline_mode<synchronous>, transform_indices = @transform_1, window_bounds = array<i64: 32, 8>}, {pipeline_mode = #tpu.pipeline_mode<synchronous>, transform_indices = @transform_2, window_bounds = array<i64: 8, 4>}, {transform_indices = @transform_3, window_bounds = array<i64: 16, 8>}, {transform_indices = @transform_4, window_bounds = array<i64: 16, 4>}]} {
    %c0 = arith.constant 0 : index
    %c0_0 = arith.constant 0 : index
    %0 = vector.load %arg1[%c0, %c0_0] : memref<16x32xbf16, #tpu.memory_space<vmem>>, vector<16x32xbf16>
    %c0_1 = arith.constant 0 : index
    %c0_2 = arith.constant 0 : index
    %1 = vector.load %arg2[%c0_1, %c0_2] : memref<32x8xbf16, #tpu.memory_space<vmem>>, vector<32x8xbf16>
    %cst = arith.constant dense<0.000000e+00> : vector<16x8xf32>
    %2 = tpu.matmul %0, %1, %cst {dimension_numbers = #tpu.dot_dimension_numbers<[1], [0], [0], [1], [0, 0, 1, 1], [], []>} : vector<16x32xbf16>, vector<32x8xbf16>, vector<16x8xf32> -> vector<16x8xf32>
    %3 = arith.truncf %2 : vector<16x8xf32> to vector<16x8xbf16>
    %c0_3 = arith.constant 0 : index
    %c0_4 = arith.constant 0 : index
    %4 = vector.load %arg4[%c0_3, %c0_4] : memref<16x8xbf16, #tpu.memory_space<vmem>>, vector<16x8xbf16>
    tpu.vector_store %arg4[%c0_3, %c0_4], %3 {strides = array<i32>} : memref<16x8xbf16, #tpu.memory_space<vmem>>, vector<16x8xbf16>,
    %c0_5 = arith.constant 0 : index
    %c0_6 = arith.constant 0 : index
    %5 = vector.load %arg3[%c0_5, %c0_6] : memref<8x4xbf16, #tpu.memory_space<vmem>>, vector<8x4xbf16>
    %cst_7 = arith.constant dense<0.000000e+00> : vector<16x4xf32>
    %6 = tpu.matmul %3, %5, %cst_7 {dimension_numbers = #tpu.dot_dimension_numbers<[1], [0], [0], [1], [0, 0, 1, 1], [], []>} : vector<16x8xbf16>, vector<8x4xbf16>, vector<16x4xf32> -> vector<16x4xf32>
    %c0_8 = arith.constant 0 : index
    %c0_9 = arith.constant 0 : index
    %7 = vector.load %arg5[%c0_8, %c0_9] : memref<16x4xf32, #tpu.memory_space<vmem>>, vector<16x4xf32>
    tpu.vector_store %arg5[%c0_8, %c0_9], %6 {strides = array<i32>} : memref<16x4xf32, #tpu.memory_space<vmem>>, vector<16x4xf32>,
    return
  }
  func.func @transform_0(%arg0: i32) -> (i32, i32) {
    %c0_i32 = arith.constant 0 : i32
    %c0_i32_0 = arith.constant 0 : i32
    return %arg0, %c0_i32 : i32, i32
  }
  func.func @transform_1(%arg0: i32) -> (i32, i32) {
    %c0_i32 = arith.constant 0 : i32
    %c0_i32_0 = arith.constant 0 : i32
    %c0_i32_1 = arith.constant 0 : i32
    return %c0_i32, %c0_i32_0 : i32, i32
  }
  func.func @transform_2(%arg0: i32) -> (i32, i32) {
    %c0_i32 = arith.constant 0 : i32
    %c0_i32_0 = arith.constant 0 : i32
    %c0_i32_1 = arith.constant 0 : i32
    return %c0_i32, %c0_i32_0 : i32, i32
  }
  func.func @transform_3(%arg0: i32) -> (i32, i32) {
    %c0_i32 = arith.constant 0 : i32
    %c0_i32_0 = arith.constant 0 : i32
    return %arg0, %c0_i32 : i32, i32
  }
  func.func @transform_4(%arg0: i32) -> (i32, i32) {
    %c0_i32 = arith.constant 0 : i32
    %c0_i32_0 = arith.constant 0 : i32
    return %arg0, %c0_i32 : i32, i32
  }
}

module attributes {stable_mosaic.version = 11 : i64} {
  func.func @_gat_attend_kernel(%arg0: i32, %arg1: memref<16x16xi8, #tpu.memory_space<vmem>>, %arg2: memref<16x8xbf16, #tpu.memory_space<vmem>>, %arg3: memref<2x16xf32, #tpu.memory_space<vmem>>, %arg4: memref<16x2xf32, #tpu.memory_space<vmem>>, %arg5: memref<1x4xf32, #tpu.memory_space<vmem>>, %arg6: memref<16x4xf32, #tpu.memory_space<vmem>>) attributes {dimension_semantics = [#tpu.dimension_semantics<parallel>], iteration_bounds = array<i64: 1>, scalar_prefetch = 0 : i64, scratch_operands = 0 : i64, tpu.core_type = #tpu.core_type<tc>, window_params = [{transform_indices = @transform_0, window_bounds = array<i64: 16, 16>}, {pipeline_mode = #tpu.pipeline_mode<synchronous>, transform_indices = @transform_1, window_bounds = array<i64: 16, 8>}, {pipeline_mode = #tpu.pipeline_mode<synchronous>, transform_indices = @transform_2, window_bounds = array<i64: 2, 16>}, {transform_indices = @transform_3, window_bounds = array<i64: 16, 2>}, {pipeline_mode = #tpu.pipeline_mode<synchronous>, transform_indices = @transform_4, window_bounds = array<i64: 1, 4>}, {transform_indices = @transform_5, window_bounds = array<i64: 16, 4>}]} {
    %c0 = arith.constant 0 : index
    %c0_0 = arith.constant 0 : index
    %0 = vector.load %arg1[%c0, %c0_0] : memref<16x16xi8, #tpu.memory_space<vmem>>, vector<16x16xi8>
    %1 = arith.sitofp %0 : vector<16x16xi8> to vector<16x16xf32>
    %cst = arith.constant 1.000000e+00 : f32
    %2 = vector.broadcast %cst : f32 to vector<16x16xf32>
    %3 = arith.subf %1, %2 : vector<16x16xf32>
    %cst_1 = arith.constant 1.000000e+09 : f32
    %4 = vector.broadcast %cst_1 : f32 to vector<16x16xf32>
    %5 = arith.mulf %3, %4 : vector<16x16xf32>
    %c0_2 = arith.constant 0 : index
    %c0_3 = arith.constant 0 : index
    %6 = vector.load %arg2[%c0_2, %c0_3] : memref<16x8xbf16, #tpu.memory_space<vmem>>, vector<16x8xbf16>
    %c0_4 = arith.constant 0 : index
    %c0_5 = arith.constant 0 : index
    %7 = vector.load %arg3[%c0_4, %c0_5] : memref<2x16xf32, #tpu.memory_space<vmem>>, vector<2x16xf32>
    %c0_6 = arith.constant 0 : index
    %c0_7 = arith.constant 0 : index
    %8 = vector.load %arg4[%c0_6, %c0_7] : memref<16x2xf32, #tpu.memory_space<vmem>>, vector<16x2xf32>
    %9 = vector.extract_strided_slice %8 {offsets = [0, 0], sizes = [16, 1], strides = [1, 1]} : vector<16x2xf32> to vector<16x1xf32>
    %10 = vector.extract_strided_slice %7 {offsets = [0, 0], sizes = [1, 16], strides = [1, 1]} : vector<2x16xf32> to vector<1x16xf32>
    %11 = vector.broadcast %9 : vector<16x1xf32> to vector<16x16xf32>
    %12 = vector.broadcast %10 : vector<1x16xf32> to vector<16x16xf32>
    %13 = arith.addf %11, %12 : vector<16x16xf32>
    %cst_8 = arith.constant 0.000000e+00 : f32
    %14 = vector.broadcast %cst_8 : f32 to vector<16x16xf32>
    %15 = arith.cmpf ogt, %13, %14 : vector<16x16xf32>
    %cst_9 = arith.constant 2.000000e-01 : f32
    %16 = vector.broadcast %cst_9 : f32 to vector<16x16xf32>
    %17 = arith.mulf %16, %13 : vector<16x16xf32>
    %18 = arith.select %15, %13, %17 : vector<16x16xi1>, vector<16x16xf32>
    %19 = arith.addf %18, %5 : vector<16x16xf32>
    %cst_10 = arith.constant dense<0xFF800000> : vector<16xf32>
    %20 = vector.multi_reduction <maximumf>, %19, %cst_10 [1] : vector<16x16xf32> to vector<16xf32>
    %21 = vector.shape_cast %20 : vector<16xf32> to vector<16x1xf32>
    %22 = vector.broadcast %21 : vector<16x1xf32> to vector<16x16xf32>
    %23 = arith.subf %19, %22 : vector<16x16xf32>
    %24 = math.exp %23 : vector<16x16xf32>
    %25 = arith.mulf %24, %1 : vector<16x16xf32>
    %cst_11 = arith.constant dense<0.000000e+00> : vector<16xf32>
    %26 = vector.multi_reduction <add>, %25, %cst_11 [1] : vector<16x16xf32> to vector<16xf32>
    %27 = vector.shape_cast %26 : vector<16xf32> to vector<16x1xf32>
    %cst_12 = arith.constant 1.000000e-30 : f32
    %28 = vector.broadcast %cst_12 : f32 to vector<16x1xf32>
    %29 = arith.maximumf %27, %28 : vector<16x1xf32>
    %30 = vector.broadcast %29 : vector<16x1xf32> to vector<16x16xf32>
    %31 = arith.divf %25, %30 : vector<16x16xf32>
    %32 = arith.truncf %31 : vector<16x16xf32> to vector<16x16xbf16>
    %33 = vector.extract_strided_slice %6 {offsets = [0, 0], sizes = [16, 4], strides = [1, 1]} : vector<16x8xbf16> to vector<16x4xbf16>
    %cst_13 = arith.constant dense<0.000000e+00> : vector<16x4xf32>
    %34 = tpu.matmul %32, %33, %cst_13 {dimension_numbers = #tpu.dot_dimension_numbers<[1], [0], [0], [1], [0, 0, 1, 1], [], []>} : vector<16x16xbf16>, vector<16x4xbf16>, vector<16x4xf32> -> vector<16x4xf32>
    %35 = vector.extract_strided_slice %8 {offsets = [0, 1], sizes = [16, 1], strides = [1, 1]} : vector<16x2xf32> to vector<16x1xf32>
    %36 = vector.extract_strided_slice %7 {offsets = [1, 0], sizes = [1, 16], strides = [1, 1]} : vector<2x16xf32> to vector<1x16xf32>
    %37 = vector.broadcast %35 : vector<16x1xf32> to vector<16x16xf32>
    %38 = vector.broadcast %36 : vector<1x16xf32> to vector<16x16xf32>
    %39 = arith.addf %37, %38 : vector<16x16xf32>
    %cst_14 = arith.constant 0.000000e+00 : f32
    %40 = vector.broadcast %cst_14 : f32 to vector<16x16xf32>
    %41 = arith.cmpf ogt, %39, %40 : vector<16x16xf32>
    %cst_15 = arith.constant 2.000000e-01 : f32
    %42 = vector.broadcast %cst_15 : f32 to vector<16x16xf32>
    %43 = arith.mulf %42, %39 : vector<16x16xf32>
    %44 = arith.select %41, %39, %43 : vector<16x16xi1>, vector<16x16xf32>
    %45 = arith.addf %44, %5 : vector<16x16xf32>
    %cst_16 = arith.constant dense<0xFF800000> : vector<16xf32>
    %46 = vector.multi_reduction <maximumf>, %45, %cst_16 [1] : vector<16x16xf32> to vector<16xf32>
    %47 = vector.shape_cast %46 : vector<16xf32> to vector<16x1xf32>
    %48 = vector.broadcast %47 : vector<16x1xf32> to vector<16x16xf32>
    %49 = arith.subf %45, %48 : vector<16x16xf32>
    %50 = math.exp %49 : vector<16x16xf32>
    %51 = arith.mulf %50, %1 : vector<16x16xf32>
    %cst_17 = arith.constant dense<0.000000e+00> : vector<16xf32>
    %52 = vector.multi_reduction <add>, %51, %cst_17 [1] : vector<16x16xf32> to vector<16xf32>
    %53 = vector.shape_cast %52 : vector<16xf32> to vector<16x1xf32>
    %cst_18 = arith.constant 1.000000e-30 : f32
    %54 = vector.broadcast %cst_18 : f32 to vector<16x1xf32>
    %55 = arith.maximumf %53, %54 : vector<16x1xf32>
    %56 = vector.broadcast %55 : vector<16x1xf32> to vector<16x16xf32>
    %57 = arith.divf %51, %56 : vector<16x16xf32>
    %58 = arith.truncf %57 : vector<16x16xf32> to vector<16x16xbf16>
    %59 = vector.extract_strided_slice %6 {offsets = [0, 4], sizes = [16, 4], strides = [1, 1]} : vector<16x8xbf16> to vector<16x4xbf16>
    %cst_19 = arith.constant dense<0.000000e+00> : vector<16x4xf32>
    %60 = tpu.matmul %58, %59, %cst_19 {dimension_numbers = #tpu.dot_dimension_numbers<[1], [0], [0], [1], [0, 0, 1, 1], [], []>} : vector<16x16xbf16>, vector<16x4xbf16>, vector<16x4xf32> -> vector<16x4xf32>
    %61 = arith.addf %34, %60 : vector<16x4xf32>
    %cst_20 = arith.constant 5.000000e-01 : f32
    %62 = vector.broadcast %cst_20 : f32 to vector<16x4xf32>
    %63 = arith.mulf %61, %62 : vector<16x4xf32>
    %c0_21 = arith.constant 0 : index
    %c0_22 = arith.constant 0 : index
    %64 = vector.load %arg5[%c0_21, %c0_22] : memref<1x4xf32, #tpu.memory_space<vmem>>, vector<1x4xf32>
    %65 = vector.broadcast %64 : vector<1x4xf32> to vector<16x4xf32>
    %66 = arith.addf %63, %65 : vector<16x4xf32>
    %c0_23 = arith.constant 0 : index
    %c0_24 = arith.constant 0 : index
    %67 = vector.load %arg6[%c0_23, %c0_24] : memref<16x4xf32, #tpu.memory_space<vmem>>, vector<16x4xf32>
    tpu.vector_store %arg6[%c0_23, %c0_24], %66 {strides = array<i32>} : memref<16x4xf32, #tpu.memory_space<vmem>>, vector<16x4xf32>,
    return
  }
  func.func @transform_0(%arg0: i32) -> (i32, i32) {
    %c0_i32 = arith.constant 0 : i32
    %c0_i32_0 = arith.constant 0 : i32
    return %arg0, %c0_i32 : i32, i32
  }
  func.func @transform_1(%arg0: i32) -> (i32, i32) {
    %c0_i32 = arith.constant 0 : i32
    %c0_i32_0 = arith.constant 0 : i32
    %c0_i32_1 = arith.constant 0 : i32
    return %c0_i32, %c0_i32_0 : i32, i32
  }
  func.func @transform_2(%arg0: i32) -> (i32, i32) {
    %c0_i32 = arith.constant 0 : i32
    %c0_i32_0 = arith.constant 0 : i32
    %c0_i32_1 = arith.constant 0 : i32
    return %c0_i32, %c0_i32_0 : i32, i32
  }
  func.func @transform_3(%arg0: i32) -> (i32, i32) {
    %c0_i32 = arith.constant 0 : i32
    %c0_i32_0 = arith.constant 0 : i32
    return %arg0, %c0_i32 : i32, i32
  }
  func.func @transform_4(%arg0: i32) -> (i32, i32) {
    %c0_i32 = arith.constant 0 : i32
    %c0_i32_0 = arith.constant 0 : i32
    %c0_i32_1 = arith.constant 0 : i32
    return %c0_i32, %c0_i32_0 : i32, i32
  }
  func.func @transform_5(%arg0: i32) -> (i32, i32) {
    %c0_i32 = arith.constant 0 : i32
    %c0_i32_0 = arith.constant 0 : i32
    return %arg0, %c0_i32 : i32, i32
  }
}

</mosaic_0001>

<llo_original>
// kernel: net_forward.4
$region0: #{net_forward.4}
  #allocation0 [shape = 'u32[]', space=smem, size = 0x4, offset = 0x4, fixed_abs, tag = 'smem constant byte address 0x4 - core index']
  #allocation1 [shape = 'u32[72,128]{1,0:T(1,128)}', space=vmem, size = 0x9000, scoped, tag = 'internal scratch']
  %s0 = inlined_call_operand.vmem [shape: bf16[16,8], index: 0, kind: input, shape index: {}]
  %s1 = inlined_call_operand.vmem [shape: bf16[8,32], index: 1, kind: input, shape index: {}]
  %s2 = inlined_call_operand.vmem [shape: bf16[32,4], index: 2, kind: input, shape index: {}]
  %s3 = inlined_call_operand.vmem [shape: bf16[16,32], index: 3, kind: output, shape index: {0}]
  %s4 = inlined_call_operand.vmem [shape: f32[16,4], index: 4, kind: output, shape index: {1}]
  %5 = xla_tuple %s3, %s4
  %s6 = sld [smem:[#allocation0]]
  $region30: #{net_forward.4} parent=0
    _
  %s8 = ssub.s32 1, %s6
  %s9 = scalar_select 0, %s8, %s6
  // Predicated region
  $region2: #{net_forward.4} parent=0 // pred_check
    _
  $region3: #{net_forward.4} parent=0 // pred_check_branch
    %11 = sbr.rel (0) target = $region5
  $region4: #{net_forward.4} parent=0 // pred_region
    _
  $region5: #{net_forward.4} parent=0 // pred_fallthru
    _
  // Predicated region
  $region6: #{net_forward.4} parent=0 // pred_check
    _
  $region7: #{net_forward.4} parent=0 // pred_check_branch
    %13 = sbr.rel (0) target = $region9
  $region8: #{net_forward.4} parent=0 // pred_region
    _
  $region9: #{net_forward.4} parent=0 // pred_fallthru
    _
  // Predicated region
  $region10: #{net_forward.4} parent=0 // pred_check
    _
  $region11: #{net_forward.4} parent=0 // pred_check_branch
    %15 = sbr.rel (0) target = $region13
  $region12: #{net_forward.4} parent=0 // pred_region
    _
  $region13: #{net_forward.4} parent=0 // pred_fallthru
    _
  %v17 = vld [vmem:[%s0] sm:$0xf]
  %v18 = vld [vmem:[%s0 + $0x4] sm:$0xf]
  %v19 = vld [vmem:[%s1] sm:$0xf]
  %v22 = vunpack.c.l.b16 %v17
  %v23 = vunpack.c.l.b16 %v18
  %v24 = vpack.c.b16 %v23, %v22
  %vm25 = vcmask 64512
  %v27 = vsel %vm25, %v24, 0
  %vm29 = vcmask 1043456
  %v31 = vsel %vm29, %v19, 0
  %33 = vmatpush.bf16.msra.mxu0 0
  %34 = vmatpush.bf16.msra.mxu0 0
  %35 = vmatpush.bf16.msra.mxu0 0
  %36 = vmatpush.bf16.msra.mxu0 0
  %37 = vmatpush.bf16.msra.mxu0 0
  %38 = vmatpush.bf16.msra.mxu0 0
  %39 = vmatpush.bf16.msra.mxu0 0
  %40 = vmatpush.bf16.msra.mxu0 %v31
  %41 = vmatmul.bf16.gmra.mxu0 %v27
  %v42 = vpop.f32.mrf.mxu0
  %v43 = vadd.f32 0.0, %v42
  %v44 = vpop.f32.mrf.mxu0
  %v45 = vadd.f32 0.0, %v44
  %46 = vdwg.mxu0
  %v47 = vpack.c.bf16 %v43, %v43
  %v48 = vpack.c.bf16 %v45, %v45
  %vm49 = vcmask 257024
  %50 = vst.msk [vmem:[%s3] sm:$0xf] %vm49, %v47
  %51 = vst.msk [vmem:[%s3 + $0x4] sm:$0xf] %vm49, %v48
  %v52 = vld [vmem:[%s2] sm:$0xf]
  %v53 = vld [vmem:[%s2 + $0x4] sm:$0xf]
  %v54 = vld [vmem:[%s2 + $0x8] sm:$0xf]
  %v55 = vld [vmem:[%s2 + $0xc] sm:$0xf]
  %v58 = vunpack.c.l.b16 %v47
  %v59 = vunpack.c.l.b16 %v48
  %v60 = vpack.c.b16 %v59, %v58
  %v65 = vunpack.c.l.b16 %v52
  %v66 = vunpack.c.l.b16 %v53
  %v67 = vunpack.c.l.b16 %v54
  %v68 = vunpack.c.l.b16 %v55
  %v69 = vpack.c.b16 %v66, %v65
  %v70 = vpack.c.b16 %v68, %v67
  %vm73 = vcmask 261120
  %v75 = vsel %vm73, %v60, 0
  %77 = vmatpush.bf16.msra.mxu0 0
  %78 = vmatpush.bf16.msra.mxu0 0
  %79 = vmatpush.bf16.msra.mxu0 0
  %80 = vmatpush.bf16.msra.mxu0 0
  %81 = vmatpush.bf16.msra.mxu0 0
  %82 = vmatpush.bf16.msra.mxu0 0
  %83 = vmatpush.bf16.msra.mxu0 %v70
  %84 = vmatpush.bf16.msra.mxu0 %v69
  %85 = vmatmul.bf16.gmra.mxu0 %v75
  %v86 = vpop.f32.mrf.mxu0
  %v87 = vadd.f32 0.0, %v86
  %v88 = vpop.f32.mrf.mxu0
  %v89 = vadd.f32 0.0, %v88
  %90 = vdwg.mxu0
  %vm91 = vcmask 31744
  %92 = vst.msk [vmem:[%s4] sm:$0xff] %vm91, %v87
  %93 = vst.msk [vmem:[%s4 + $0x8] sm:$0xff] %vm91, %v89
  // Predicated region
  $region14: #{net_forward.4} parent=0 // pred_check
    _
  $region15: #{net_forward.4} parent=0 // pred_check_branch
    %95 = sbr.rel (0) target = $region17
  $region16: #{net_forward.4} parent=0 // pred_region
    _
  $region17: #{net_forward.4} parent=0 // pred_fallthru
    _
  // Predicated region
  $region18: #{net_forward.4} parent=0 // pred_check
    _
  $region19: #{net_forward.4} parent=0 // pred_check_branch
    %97 = sbr.rel (0) target = $region21
  $region20: #{net_forward.4} parent=0 // pred_region
    _
  $region21: #{net_forward.4} parent=0 // pred_fallthru
    _
  // Predicated region
  $region22: #{net_forward.4} parent=0 // pred_check
    _
  $region23: #{net_forward.4} parent=0 // pred_check_branch
    %99 = sbr.rel (0) target = $region25
  $region24: #{net_forward.4} parent=0 // pred_region
    _
  $region25: #{net_forward.4} parent=0 // pred_fallthru
    _
  // Predicated region
  $region26: #{net_forward.4} parent=0 // pred_check
    _
  $region27: #{net_forward.4} parent=0 // pred_check_branch
    %101 = sbr.rel (0) target = $region29
  $region28: #{net_forward.4} parent=0 // pred_region
    _
  $region29: #{net_forward.4} parent=0 // pred_fallthru
    _

// kernel: net_forward.5
$region0: #{net_forward.5}
  #allocation0 [shape = 'u32[]', space=smem, size = 0x4, offset = 0x4, fixed_abs, tag = 'smem constant byte address 0x4 - core index']
  #allocation1 [shape = 'u32[72,128]{1,0:T(1,128)}', space=vmem, size = 0x9000, scoped, tag = 'internal scratch']
  %s0 = inlined_call_operand.vmem [shape: s8[16,16], index: 0, kind: input, shape index: {}]
  %s1 = inlined_call_operand.vmem [shape: bf16[16,32], index: 1, kind: input, shape index: {}]
  %s2 = inlined_call_operand.vmem [shape: f32[2,16], index: 2, kind: input, shape index: {}]
  %s3 = inlined_call_operand.vmem [shape: f32[16,2], index: 3, kind: input, shape index: {}]
  %s4 = inlined_call_operand.vmem [shape: f32[1,32], index: 4, kind: input, shape index: {}]
  %s5 = inlined_call_operand.vmem [shape: bf16[16,32], index: 5, kind: output, shape index: {}]
  %s6 = sld [smem:[#allocation0]]
  $region30: #{net_forward.5} parent=0
    _
  %s8 = ssub.s32 1, %s6
  %s9 = scalar_select 0, %s8, %s6
  // Predicated region
  $region2: #{net_forward.5} parent=0 // pred_check
    _
  $region3: #{net_forward.5} parent=0 // pred_check_branch
    %11 = sbr.rel (0) target = $region5
  $region4: #{net_forward.5} parent=0 // pred_region
    _
  $region5: #{net_forward.5} parent=0 // pred_fallthru
    _
  // Predicated region
  $region6: #{net_forward.5} parent=0 // pred_check
    _
  $region7: #{net_forward.5} parent=0 // pred_check_branch
    %13 = sbr.rel (0) target = $region9
  $region8: #{net_forward.5} parent=0 // pred_region
    _
  $region9: #{net_forward.5} parent=0 // pred_fallthru
    _
  // Predicated region
  $region10: #{net_forward.5} parent=0 // pred_check
    _
  $region11: #{net_forward.5} parent=0 // pred_check_branch
    %15 = sbr.rel (0) target = $region13
  $region12: #{net_forward.5} parent=0 // pred_region
    _
  $region13: #{net_forward.5} parent=0 // pred_fallthru
    _
  // Predicated region
  $region14: #{net_forward.5} parent=0 // pred_check
    _
  $region15: #{net_forward.5} parent=0 // pred_check_branch
    %17 = sbr.rel (0) target = $region17
  $region16: #{net_forward.5} parent=0 // pred_region
    _
  $region17: #{net_forward.5} parent=0 // pred_fallthru
    _
  // Predicated region
  $region18: #{net_forward.5} parent=0 // pred_check
    _
  $region19: #{net_forward.5} parent=0 // pred_check_branch
    %19 = sbr.rel (0) target = $region21
  $region20: #{net_forward.5} parent=0 // pred_region
    _
  $region21: #{net_forward.5} parent=0 // pred_fallthru
    _
  %v21 = vld [vmem:[%s0] sm:$0x3]
  %v22 = vld [vmem:[%s0 + $0x2] sm:$0x3]
  %v23 = vunpack.c.0.s8 %v21
  %v24 = vunpack.c.0.s8 %v22
  %v25 = vcvt.s32.f32 %v23
  %v26 = vcvt.s32.f32 %v24
  %v27 = vsub.f32 %v25, 1.0
  %v28 = vsub.f32 %v26, 1.0
  %v29 = vmul.f32 %v27, 1e+09
  %v30 = vmul.f32 %v28, 1e+09
  %v31 = vld [vmem:[%s1] sm:$0xf]
  %v32 = vld [vmem:[%s1 + $0x4] sm:$0xf]
  %v33 = vld [vmem:[%s2] sm:$0x3]
  %v34 = vld [vmem:[%s3] sm:$0xff]
  %v35 = vld [vmem:[%s3 + $0x8] sm:$0xff]
  %37 = vset.pattern.permute.xlu0 0
  %38 = vperm.xlu0 %37, %v34
  %v39 = vpop.permute.xlu0 %38
  %42 = vset.pattern.permute.xlu0 0
  %43 = vperm.xlu0 %42, %v35
  %v44 = vpop.permute.xlu0 %43
  %v46 = vperm.slane %v33, 0
  %v47 = vadd.f32 %v39, %v46
  %v48 = vadd.f32 %v44, %v46
  %vm49 = vcmp.gt.f32.partialorder %v47, 0.0
  %vm50 = vcmp.gt.f32.partialorder %v48, 0.0
  %v51 = vmul.f32 %v47, 0.2
  %v52 = vmul.f32 %v48, 0.2
  %v53 = vsel %vm49, %v47, %v51
  %v54 = vsel %vm50, %v48, %v52
  %v55 = vadd.f32 %v53, %v29
  %v56 = vadd.f32 %v54, %v30
  %vm57 = vcmask 130048
  %v58 = vsel %vm57, %v55, -inf
  %59 = vmax.xlane.f32.xlu0 %v58
  %v60 = vpop.xlane.xlu0 %59
  %v61 = vsel %vm57, %v56, -inf
  %62 = vmax.xlane.f32.xlu0 %v61
  %v63 = vpop.xlane.xlu0 %62
  %v64 = vsub.f32 %v55, %v60
  %v65 = vsub.f32 %v56, %v63
  %v66 = vmul.f32 %v64, 1.442695
  %v67 = vpow.pop %v66
  %v68 = vmul.f32 %v65, 1.442695
  %v69 = vpow.pop %v68
  %v70 = vmul.f32 %v67, %v25
  %v71 = vmul.f32 %v69, %v26
  %v72 = vsel %vm57, %v70, 0.0
  %73 = vadd.xlane.f32.xlu0 %v72
  %v74 = vpop.xlane.xlu0 %73
  %v75 = vsel %vm57, %v71, 0.0
  %76 = vadd.xlane.f32.xlu0 %v75
  %v77 = vpop.xlane.xlu0 %76
  %v78 = vmax.f32 %v74, 1e-30
  %v79 = vmax.f32 %v77, 1e-30
  %v80 = vrcp.pop %v78
  %v81 = vmul.f32 %v78, %v80
  %v82 = vsub.f32 1.0, %v81
  %v83 = vmul.f32 %v80, %v82
  %v84 = vadd.f32 %v80, %v83
  %vm85 = vweird.f32 %v78
  %vm86 = vweird.f32 %v80
  %vm87 = vmor %vm85, %vm86
  %v88 = vsel %vm87, %v80, %v84
  %v89 = vand.u32 2147483647, %v78
  %vm90 = vcmp.eq.f32.partialorder %v89, 8.507059e+37
  %v91 = vand.u32 %v78, 2147483648
  %v92 = vor.u32 1.1754944e-38, %v91
  %v93 = vsel %vm90, %v92, %v88
  %v94 = vmul.f32 %v70, %v93
  %v95 = vrcp.pop %v79
  %v96 = vmul.f32 %v79, %v95
  %v97 = vsub.f32 1.0, %v96
  %v98 = vmul.f32 %v95, %v97
  %v99 = vadd.f32 %v95, %v98
  %vm100 = vweird.f32 %v79
  %vm101 = vweird.f32 %v95
  %vm102 = vmor %vm100, %vm101
  %v103 = vsel %vm102, %v95, %v99
  %v104 = vand.u32 2147483647, %v79
  %vm105 = vcmp.eq.f32.partialorder %v104, 8.507059e+37
  %v106 = vand.u32 %v79, 2147483648
  %v107 = vor.u32 1.1754944e-38, %v106
  %v108 = vsel %vm105, %v107, %v103
  %v109 = vmul.f32 %v71, %v108
  %v110 = vpack.c.bf16 %v109, %v94
  %v113 = vunpack.c.l.b16 %v31
  %v114 = vunpack.c.l.b16 %v32
  %v115 = vpack.c.b16 %v114, %v113
  %v118 = vsel %vm57, %v110, 0
  %120 = vmatpush.bf16.msra.mxu0 0
  %121 = vmatpush.bf16.msra.mxu0 0
  %122 = vmatpush.bf16.msra.mxu0 0
  %123 = vmatpush.bf16.msra.mxu0 0
  %124 = vmatpush.bf16.msra.mxu0 0
  %125 = vmatpush.bf16.msra.mxu0 0
  %126 = vmatpush.bf16.msra.mxu0 0
  %127 = vmatpush.bf16.msra.mxu0 %v115
  %128 = vmatmul.bf16.gmra.mxu0 %v118
  %v129 = vpop.f32.mrf.mxu0
  %v130 = vadd.f32 0.0, %v129
  %v131 = vpop.f32.mrf.mxu0
  %v132 = vadd.f32 0.0, %v131
  %133 = vdwg.mxu0
  %134 = vset.pattern.permute.xlu0 1
  %135 = vperm.xlu0 %134, %v34
  %v136 = vpop.permute.xlu0 %135
  %138 = vset.pattern.permute.xlu0 1
  %139 = vperm.xlu0 %138, %v35
  %v140 = vpop.permute.xlu0 %139
  %v142 = vperm.slane %v33, 1
  %v143 = vadd.f32 %v136, %v142
  %v144 = vadd.f32 %v140, %v142
  %vm145 = vcmp.gt.f32.partialorder %v143, 0.0
  %vm146 = vcmp.gt.f32.partialorder %v144, 0.0
  %v147 = vmul.f32 %v143, 0.2
  %v148 = vmul.f32 %v144, 0.2
  %v149 = vsel %vm145, %v143, %v147
  %v150 = vsel %vm146, %v144, %v148
  %v151 = vadd.f32 %v149, %v29
  %v152 = vadd.f32 %v150, %v30
  %v153 = vsel %vm57, %v151, -inf
  %154 = vmax.xlane.f32.xlu0 %v153
  %v155 = vpop.xlane.xlu0 %154
  %v156 = vsel %vm57, %v152, -inf
  %157 = vmax.xlane.f32.xlu0 %v156
  %v158 = vpop.xlane.xlu0 %157
  %v159 = vsub.f32 %v151, %v155
  %v160 = vsub.f32 %v152, %v158
  %v161 = vmul.f32 %v159, 1.442695
  %v162 = vpow.pop %v161
  %v163 = vmul.f32 %v160, 1.442695
  %v164 = vpow.pop %v163
  %v165 = vmul.f32 %v162, %v25
  %v166 = vmul.f32 %v164, %v26
  %v167 = vsel %vm57, %v165, 0.0
  %168 = vadd.xlane.f32.xlu0 %v167
  %v169 = vpop.xlane.xlu0 %168
  %v170 = vsel %vm57, %v166, 0.0
  %171 = vadd.xlane.f32.xlu0 %v170
  %v172 = vpop.xlane.xlu0 %171
  %v173 = vmax.f32 %v169, 1e-30
  %v174 = vmax.f32 %v172, 1e-30
  %v175 = vrcp.pop %v173
  %v176 = vmul.f32 %v173, %v175
  %v177 = vsub.f32 1.0, %v176
  %v178 = vmul.f32 %v175, %v177
  %v179 = vadd.f32 %v175, %v178
  %vm180 = vweird.f32 %v173
  %vm181 = vweird.f32 %v175
  %vm182 = vmor %vm180, %vm181
  %v183 = vsel %vm182, %v175, %v179
  %v184 = vand.u32 2147483647, %v173
  %vm185 = vcmp.eq.f32.partialorder %v184, 8.507059e+37
  %v186 = vand.u32 %v173, 2147483648
  %v187 = vor.u32 1.1754944e-38, %v186
  %v188 = vsel %vm185, %v187, %v183
  %v189 = vmul.f32 %v165, %v188
  %v190 = vrcp.pop %v174
  %v191 = vmul.f32 %v174, %v190
  %v192 = vsub.f32 1.0, %v191
  %v193 = vmul.f32 %v190, %v192
  %v194 = vadd.f32 %v190, %v193
  %vm195 = vweird.f32 %v174
  %vm196 = vweird.f32 %v190
  %vm197 = vmor %vm195, %vm196
  %v198 = vsel %vm197, %v190, %v194
  %v199 = vand.u32 2147483647, %v174
  %vm200 = vcmp.eq.f32.partialorder %v199, 8.507059e+37
  %v201 = vand.u32 %v174, 2147483648
  %v202 = vor.u32 1.1754944e-38, %v201
  %v203 = vsel %vm200, %v202, %v198
  %v204 = vmul.f32 %v166, %v203
  %v205 = vpack.c.bf16 %v204, %v189
  %206 = vrot.lane.b32.xlu0 %v115, 112
  %v207 = vpop.permute.xlu0 %206
  %v210 = vsel %vm57, %v205, 0
  %212 = vmatpush.bf16.msra.mxu0 0
  %213 = vmatpush.bf16.msra.mxu0 0
  %214 = vmatpush.bf16.msra.mxu0 0
  %215 = vmatpush.bf16.msra.mxu0 0
  %216 = vmatpush.bf16.msra.mxu0 0
  %217 = vmatpush.bf16.msra.mxu0 0
  %218 = vmatpush.bf16.msra.mxu0 0
  %219 = vmatpush.bf16.msra.mxu0 %v207
  %220 = vmatmul.bf16.gmra.mxu0 %v210
  %v221 = vpop.f32.mrf.mxu0
  %v222 = vadd.f32 0.0, %v221
  %v223 = vpop.f32.mrf.mxu0
  %v224 = vadd.f32 0.0, %v223
  %225 = vdwg.mxu0
  %228 = vrot.lane.b32.xlu0 %v222, 16
  %v229 = vpop.permute.xlu0 %228
  %230 = vrot.lane.b32.xlu0 %v224, 16
  %v231 = vpop.permute.xlu0 %230
  %v234 = vsel %vm57, %v130, %v229
  %v235 = vsel %vm57, %v132, %v231
  %v236 = vld [vmem:[%s4] sm:$0x1]
  %v238 = vperm.slane %v236, 0
  %v240 = vadd.f32 %v234, %v238
  %v241 = vadd.f32 %v235, %v238
  %v242 = vpack.c.bf16 %v240, %v240
  %v243 = vpack.c.bf16 %v241, %v241
  %vm244 = vcmask 257024
  %245 = vst.msk [vmem:[%s5] sm:$0xf] %vm244, %v242
  %246 = vst.msk [vmem:[%s5 + $0x4] sm:$0xf] %vm244, %v243
  // Predicated region
  $region22: #{net_forward.5} parent=0 // pred_check
    _
  $region23: #{net_forward.5} parent=0 // pred_check_branch
    %248 = sbr.rel (0) target = $region25
  $region24: #{net_forward.5} parent=0 // pred_region
    _
  $region25: #{net_forward.5} parent=0 // pred_fallthru
    _
  // Predicated region
  $region26: #{net_forward.5} parent=0 // pred_check
    _
  $region27: #{net_forward.5} parent=0 // pred_check_branch
    %250 = sbr.rel (0) target = $region29
  $region28: #{net_forward.5} parent=0 // pred_region
    _
  $region29: #{net_forward.5} parent=0 // pred_fallthru
    _

// kernel: net_forward.6
$region0: #{net_forward.6}
  #allocation0 [shape = 'u32[]', space=smem, size = 0x4, offset = 0x4, fixed_abs, tag = 'smem constant byte address 0x4 - core index']
  #allocation1 [shape = 'u32[72,128]{1,0:T(1,128)}', space=vmem, size = 0x9000, scoped, tag = 'internal scratch']
  %s0 = inlined_call_operand.vmem [shape: bf16[16,32], index: 0, kind: input, shape index: {}]
  %s1 = inlined_call_operand.vmem [shape: bf16[32,8], index: 1, kind: input, shape index: {}]
  %s2 = inlined_call_operand.vmem [shape: bf16[8,4], index: 2, kind: input, shape index: {}]
  %s3 = inlined_call_operand.vmem [shape: bf16[16,8], index: 3, kind: output, shape index: {0}]
  %s4 = inlined_call_operand.vmem [shape: f32[16,4], index: 4, kind: output, shape index: {1}]
  %5 = xla_tuple %s3, %s4
  %s6 = sld [smem:[#allocation0]]
  $region30: #{net_forward.6} parent=0
    _
  %s8 = ssub.s32 1, %s6
  %s9 = scalar_select 0, %s8, %s6
  // Predicated region
  $region2: #{net_forward.6} parent=0 // pred_check
    _
  $region3: #{net_forward.6} parent=0 // pred_check_branch
    %11 = sbr.rel (0) target = $region5
  $region4: #{net_forward.6} parent=0 // pred_region
    _
  $region5: #{net_forward.6} parent=0 // pred_fallthru
    _
  // Predicated region
  $region6: #{net_forward.6} parent=0 // pred_check
    _
  $region7: #{net_forward.6} parent=0 // pred_check_branch
    %13 = sbr.rel (0) target = $region9
  $region8: #{net_forward.6} parent=0 // pred_region
    _
  $region9: #{net_forward.6} parent=0 // pred_fallthru
    _
  // Predicated region
  $region10: #{net_forward.6} parent=0 // pred_check
    _
  $region11: #{net_forward.6} parent=0 // pred_check_branch
    %15 = sbr.rel (0) target = $region13
  $region12: #{net_forward.6} parent=0 // pred_region
    _
  $region13: #{net_forward.6} parent=0 // pred_fallthru
    _
  %v17 = vld [vmem:[%s0] sm:$0xf]
  %v18 = vld [vmem:[%s0 + $0x4] sm:$0xf]
  %v19 = vld [vmem:[%s1] sm:$0xf]
  %v20 = vld [vmem:[%s1 + $0x4] sm:$0xf]
  %v21 = vld [vmem:[%s1 + $0x8] sm:$0xf]
  %v22 = vld [vmem:[%s1 + $0xc] sm:$0xf]
  %v25 = vunpack.c.l.b16 %v17
  %v26 = vunpack.c.l.b16 %v18
  %v27 = vpack.c.b16 %v26, %v25
  %v32 = vunpack.c.l.b16 %v19
  %v33 = vunpack.c.l.b16 %v20
  %v34 = vunpack.c.l.b16 %v21
  %v35 = vunpack.c.l.b16 %v22
  %v36 = vpack.c.b16 %v33, %v32
  %v37 = vpack.c.b16 %v35, %v34
  %vm40 = vcmask 261120
  %v42 = vsel %vm40, %v27, 0
  %44 = vmatpush.bf16.msra.mxu0 0
  %45 = vmatpush.bf16.msra.mxu0 0
  %46 = vmatpush.bf16.msra.mxu0 0
  %47 = vmatpush.bf16.msra.mxu0 0
  %48 = vmatpush.bf16.msra.mxu0 0
  %49 = vmatpush.bf16.msra.mxu0 0
  %50 = vmatpush.bf16.msra.mxu0 %v37
  %51 = vmatpush.bf16.msra.mxu0 %v36
  %52 = vmatmul.bf16.gmra.mxu0 %v42
  %v53 = vpop.f32.mrf.mxu0
  %v54 = vadd.f32 0.0, %v53
  %v55 = vpop.f32.mrf.mxu0
  %v56 = vadd.f32 0.0, %v55
  %57 = vdwg.mxu0
  %v58 = vpack.c.bf16 %v54, %v54
  %v59 = vpack.c.bf16 %v56, %v56
  %vm60 = vcmask 60416
  %61 = vst.msk [vmem:[%s3] sm:$0xf] %vm60, %v58
  %62 = vst.msk [vmem:[%s3 + $0x4] sm:$0xf] %vm60, %v59
  %v63 = vld [vmem:[%s2] sm:$0xf]
  %v66 = vunpack.c.l.b16 %v58
  %v67 = vunpack.c.l.b16 %v59
  %v68 = vpack.c.b16 %v67, %v66
  %vm69 = vcmask 64512
  %v71 = vsel %vm69, %v68, 0
  %vm73 = vcmask 1043456
  %v75 = vsel %vm73, %v63, 0
  %77 = vmatpush.bf16.msra.mxu0 0
  %78 = vmatpush.bf16.msra.mxu0 0
  %79 = vmatpush.bf16.msra.mxu0 0
  %80 = vmatpush.bf16.msra.mxu0 0
  %81 = vmatpush.bf16.msra.mxu0 0
  %82 = vmatpush.bf16.msra.mxu0 0
  %83 = vmatpush.bf16.msra.mxu0 0
  %84 = vmatpush.bf16.msra.mxu0 %v75
  %85 = vmatmul.bf16.gmra.mxu0 %v71
  %v86 = vpop.f32.mrf.mxu0
  %v87 = vadd.f32 0.0, %v86
  %v88 = vpop.f32.mrf.mxu0
  %v89 = vadd.f32 0.0, %v88
  %90 = vdwg.mxu0
  %vm91 = vcmask 31744
  %92 = vst.msk [vmem:[%s4] sm:$0xff] %vm91, %v87
  %93 = vst.msk [vmem:[%s4 + $0x8] sm:$0xff] %vm91, %v89
  // Predicated region
  $region14: #{net_forward.6} parent=0 // pred_check
    _
  $region15: #{net_forward.6} parent=0 // pred_check_branch
    %95 = sbr.rel (0) target = $region17
  $region16: #{net_forward.6} parent=0 // pred_region
    _
  $region17: #{net_forward.6} parent=0 // pred_fallthru
    _
  // Predicated region
  $region18: #{net_forward.6} parent=0 // pred_check
    _
  $region19: #{net_forward.6} parent=0 // pred_check_branch
    %97 = sbr.rel (0) target = $region21
  $region20: #{net_forward.6} parent=0 // pred_region
    _
  $region21: #{net_forward.6} parent=0 // pred_fallthru
    _
  // Predicated region
  $region22: #{net_forward.6} parent=0 // pred_check
    _
  $region23: #{net_forward.6} parent=0 // pred_check_branch
    %99 = sbr.rel (0) target = $region25
  $region24: #{net_forward.6} parent=0 // pred_region
    _
  $region25: #{net_forward.6} parent=0 // pred_fallthru
    _
  // Predicated region
  $region26: #{net_forward.6} parent=0 // pred_check
    _
  $region27: #{net_forward.6} parent=0 // pred_check_branch
    %101 = sbr.rel (0) target = $region29
  $region28: #{net_forward.6} parent=0 // pred_region
    _
  $region29: #{net_forward.6} parent=0 // pred_fallthru
    _

// kernel: net_forward.7
$region0: #{net_forward.7}
  #allocation0 [shape = 'u32[]', space=smem, size = 0x4, offset = 0x4, fixed_abs, tag = 'smem constant byte address 0x4 - core index']
  #allocation1 [shape = 'u32[72,128]{1,0:T(1,128)}', space=vmem, size = 0x9000, scoped, tag = 'internal scratch']
  %s0 = inlined_call_operand.vmem [shape: s8[16,16], index: 0, kind: input, shape index: {}]
  %s1 = inlined_call_operand.vmem [shape: bf16[16,8], index: 1, kind: input, shape index: {}]
  %s2 = inlined_call_operand.vmem [shape: f32[2,16], index: 2, kind: input, shape index: {}]
  %s3 = inlined_call_operand.vmem [shape: f32[16,2], index: 3, kind: input, shape index: {}]
  %s4 = inlined_call_operand.vmem [shape: f32[1,4], index: 4, kind: input, shape index: {}]
  %s5 = inlined_call_operand.vmem [shape: f32[16,4], index: 5, kind: output, shape index: {}]
  %s6 = sld [smem:[#allocation0]]
  $region30: #{net_forward.7} parent=0
    _
  %s8 = ssub.s32 1, %s6
  %s9 = scalar_select 0, %s8, %s6
  // Predicated region
  $region2: #{net_forward.7} parent=0 // pred_check
    _
  $region3: #{net_forward.7} parent=0 // pred_check_branch
    %11 = sbr.rel (0) target = $region5
  $region4: #{net_forward.7} parent=0 // pred_region
    _
  $region5: #{net_forward.7} parent=0 // pred_fallthru
    _
  // Predicated region
  $region6: #{net_forward.7} parent=0 // pred_check
    _
  $region7: #{net_forward.7} parent=0 // pred_check_branch
    %13 = sbr.rel (0) target = $region9
  $region8: #{net_forward.7} parent=0 // pred_region
    _
  $region9: #{net_forward.7} parent=0 // pred_fallthru
    _
  // Predicated region
  $region10: #{net_forward.7} parent=0 // pred_check
    _
  $region11: #{net_forward.7} parent=0 // pred_check_branch
    %15 = sbr.rel (0) target = $region13
  $region12: #{net_forward.7} parent=0 // pred_region
    _
  $region13: #{net_forward.7} parent=0 // pred_fallthru
    _
  // Predicated region
  $region14: #{net_forward.7} parent=0 // pred_check
    _
  $region15: #{net_forward.7} parent=0 // pred_check_branch
    %17 = sbr.rel (0) target = $region17
  $region16: #{net_forward.7} parent=0 // pred_region
    _
  $region17: #{net_forward.7} parent=0 // pred_fallthru
    _
  // Predicated region
  $region18: #{net_forward.7} parent=0 // pred_check
    _
  $region19: #{net_forward.7} parent=0 // pred_check_branch
    %19 = sbr.rel (0) target = $region21
  $region20: #{net_forward.7} parent=0 // pred_region
    _
  $region21: #{net_forward.7} parent=0 // pred_fallthru
    _
  %v21 = vld [vmem:[%s0] sm:$0x3]
  %v22 = vld [vmem:[%s0 + $0x2] sm:$0x3]
  %v23 = vunpack.c.0.s8 %v21
  %v24 = vunpack.c.0.s8 %v22
  %v25 = vcvt.s32.f32 %v23
  %v26 = vcvt.s32.f32 %v24
  %v27 = vsub.f32 %v25, 1.0
  %v28 = vsub.f32 %v26, 1.0
  %v29 = vmul.f32 %v27, 1e+09
  %v30 = vmul.f32 %v28, 1e+09
  %v31 = vld [vmem:[%s1] sm:$0xf]
  %v32 = vld [vmem:[%s1 + $0x4] sm:$0xf]
  %v33 = vld [vmem:[%s2] sm:$0x3]
  %v34 = vld [vmem:[%s3] sm:$0xff]
  %v35 = vld [vmem:[%s3 + $0x8] sm:$0xff]
  %37 = vset.pattern.permute.xlu0 0
  %38 = vperm.xlu0 %37, %v34
  %v39 = vpop.permute.xlu0 %38
  %42 = vset.pattern.permute.xlu0 0
  %43 = vperm.xlu0 %42, %v35
  %v44 = vpop.permute.xlu0 %43
  %v46 = vperm.slane %v33, 0
  %v47 = vadd.f32 %v39, %v46
  %v48 = vadd.f32 %v44, %v46
  %vm49 = vcmp.gt.f32.partialorder %v47, 0.0
  %vm50 = vcmp.gt.f32.partialorder %v48, 0.0
  %v51 = vmul.f32 %v47, 0.2
  %v52 = vmul.f32 %v48, 0.2
  %v53 = vsel %vm49, %v47, %v51
  %v54 = vsel %vm50, %v48, %v52
  %v55 = vadd.f32 %v53, %v29
  %v56 = vadd.f32 %v54, %v30
  %vm57 = vcmask 130048
  %v58 = vsel %vm57, %v55, -inf
  %59 = vmax.xlane.f32.xlu0 %v58
  %v60 = vpop.xlane.xlu0 %59
  %v61 = vsel %vm57, %v56, -inf
  %62 = vmax.xlane.f32.xlu0 %v61
  %v63 = vpop.xlane.xlu0 %62
  %v64 = vsub.f32 %v55, %v60
  %v65 = vsub.f32 %v56, %v63
  %v66 = vmul.f32 %v64, 1.442695
  %v67 = vpow.pop %v66
  %v68 = vmul.f32 %v65, 1.442695
  %v69 = vpow.pop %v68
  %v70 = vmul.f32 %v67, %v25
  %v71 = vmul.f32 %v69, %v26
  %v72 = vsel %vm57, %v70, 0.0
  %73 = vadd.xlane.f32.xlu0 %v72
  %v74 = vpop.xlane.xlu0 %73
  %v75 = vsel %vm57, %v71, 0.0
  %76 = vadd.xlane.f32.xlu0 %v75
  %v77 = vpop.xlane.xlu0 %76
  %v78 = vmax.f32 %v74, 1e-30
  %v79 = vmax.f32 %v77, 1e-30
  %v80 = vrcp.pop %v78
  %v81 = vmul.f32 %v78, %v80
  %v82 = vsub.f32 1.0, %v81
  %v83 = vmul.f32 %v80, %v82
  %v84 = vadd.f32 %v80, %v83
  %vm85 = vweird.f32 %v78
  %vm86 = vweird.f32 %v80
  %vm87 = vmor %vm85, %vm86
  %v88 = vsel %vm87, %v80, %v84
  %v89 = vand.u32 2147483647, %v78
  %vm90 = vcmp.eq.f32.partialorder %v89, 8.507059e+37
  %v91 = vand.u32 %v78, 2147483648
  %v92 = vor.u32 1.1754944e-38, %v91
  %v93 = vsel %vm90, %v92, %v88
  %v94 = vmul.f32 %v70, %v93
  %v95 = vrcp.pop %v79
  %v96 = vmul.f32 %v79, %v95
  %v97 = vsub.f32 1.0, %v96
  %v98 = vmul.f32 %v95, %v97
  %v99 = vadd.f32 %v95, %v98
  %vm100 = vweird.f32 %v79
  %vm101 = vweird.f32 %v95
  %vm102 = vmor %vm100, %vm101
  %v103 = vsel %vm102, %v95, %v99
  %v104 = vand.u32 2147483647, %v79
  %vm105 = vcmp.eq.f32.partialorder %v104, 8.507059e+37
  %v106 = vand.u32 %v79, 2147483648
  %v107 = vor.u32 1.1754944e-38, %v106
  %v108 = vsel %vm105, %v107, %v103
  %v109 = vmul.f32 %v71, %v108
  %v110 = vpack.c.bf16 %v109, %v94
  %111 = vset.pattern.permute.xlu0 1
  %112 = vperm.xlu0 %111, %v34
  %v113 = vpop.permute.xlu0 %112
  %115 = vset.pattern.permute.xlu0 1
  %116 = vperm.xlu0 %115, %v35
  %v117 = vpop.permute.xlu0 %116
  %v119 = vperm.slane %v33, 1
  %v120 = vadd.f32 %v113, %v119
  %v121 = vadd.f32 %v117, %v119
  %vm122 = vcmp.gt.f32.partialorder %v120, 0.0
  %vm123 = vcmp.gt.f32.partialorder %v121, 0.0
  %v124 = vmul.f32 %v120, 0.2
  %v125 = vmul.f32 %v121, 0.2
  %v126 = vsel %vm122, %v120, %v124
  %v127 = vsel %vm123, %v121, %v125
  %v128 = vadd.f32 %v126, %v29
  %v129 = vadd.f32 %v127, %v30
  %v130 = vsel %vm57, %v128, -inf
  %131 = vmax.xlane.f32.xlu0 %v130
  %v132 = vpop.xlane.xlu0 %131
  %v133 = vsel %vm57, %v129, -inf
  %134 = vmax.xlane.f32.xlu0 %v133
  %v135 = vpop.xlane.xlu0 %134
  %v136 = vsub.f32 %v128, %v132
  %v137 = vsub.f32 %v129, %v135
  %v138 = vmul.f32 %v136, 1.442695
  %v139 = vpow.pop %v138
  %v140 = vmul.f32 %v137, 1.442695
  %v141 = vpow.pop %v140
  %v142 = vmul.f32 %v139, %v25
  %v143 = vmul.f32 %v141, %v26
  %v144 = vsel %vm57, %v142, 0.0
  %145 = vadd.xlane.f32.xlu0 %v144
  %v146 = vpop.xlane.xlu0 %145
  %v147 = vsel %vm57, %v143, 0.0
  %148 = vadd.xlane.f32.xlu0 %v147
  %v149 = vpop.xlane.xlu0 %148
  %v150 = vmax.f32 %v146, 1e-30
  %v151 = vmax.f32 %v149, 1e-30
  %v152 = vrcp.pop %v150
  %v153 = vmul.f32 %v150, %v152
  %v154 = vsub.f32 1.0, %v153
  %v155 = vmul.f32 %v152, %v154
  %v156 = vadd.f32 %v152, %v155
  %vm157 = vweird.f32 %v150
  %vm158 = vweird.f32 %v152
  %vm159 = vmor %vm157, %vm158
  %v160 = vsel %vm159, %v152, %v156
  %v161 = vand.u32 2147483647, %v150
  %vm162 = vcmp.eq.f32.partialorder %v161, 8.507059e+37
  %v163 = vand.u32 %v150, 2147483648
  %v164 = vor.u32 1.1754944e-38, %v163
  %v165 = vsel %vm162, %v164, %v160
  %v166 = vmul.f32 %v142, %v165
  %v167 = vrcp.pop %v151
  %v168 = vmul.f32 %v151, %v167
  %v169 = vsub.f32 1.0, %v168
  %v170 = vmul.f32 %v167, %v169
  %v171 = vadd.f32 %v167, %v170
  %vm172 = vweird.f32 %v151
  %vm173 = vweird.f32 %v167
  %vm174 = vmor %vm172, %vm173
  %v175 = vsel %vm174, %v167, %v171
  %v176 = vand.u32 2147483647, %v151
  %vm177 = vcmp.eq.f32.partialorder %v176, 8.507059e+37
  %v178 = vand.u32 %v151, 2147483648
  %v179 = vor.u32 1.1754944e-38, %v178
  %v180 = vsel %vm177, %v179, %v175
  %v181 = vmul.f32 %v143, %v180
  %v182 = vpack.c.bf16 %v181, %v166
  %v185 = vunpack.c.l.b16 %v31
  %v186 = vunpack.c.l.b16 %v32
  %v187 = vpack.c.b16 %v186, %v185
  %188 = vrot.lane.b32.xlu0 %v187, 124
  %v189 = vpop.permute.xlu0 %188
  %v192 = vsel %vm57, %v182, 0
  %194 = vmatpush.bf16.msra.mxu0 0
  %195 = vmatpush.bf16.msra.mxu0 0
  %196 = vmatpush.bf16.msra.mxu0 0
  %197 = vmatpush.bf16.msra.mxu0 0
  %198 = vmatpush.bf16.msra.mxu0 0
  %199 = vmatpush.bf16.msra.mxu0 0
  %200 = vmatpush.bf16.msra.mxu0 0
  %201 = vmatpush.bf16.msra.mxu0 %v189
  %202 = vmatmul.bf16.gmra.mxu0 %v192
  %v203 = vpop.f32.mrf.mxu0
  %v204 = vadd.f32 0.0, %v203
  %v205 = vpop.f32.mrf.mxu0
  %v206 = vadd.f32 0.0, %v205
  %207 = vdwg.mxu0
  %v210 = vsel %vm57, %v110, 0
  %212 = vmatpush.bf16.msra.mxu0 0
  %213 = vmatpush.bf16.msra.mxu0 0
  %214 = vmatpush.bf16.msra.mxu0 0
  %215 = vmatpush.bf16.msra.mxu0 0
  %216 = vmatpush.bf16.msra.mxu0 0
  %217 = vmatpush.bf16.msra.mxu0 0
  %218 = vmatpush.bf16.msra.mxu0 0
  %219 = vmatpush.bf16.msra.mxu0 %v187
  %220 = vmatmul.bf16.gmra.mxu0 %v210
  %v221 = vpop.f32.mrf.mxu0
  %v222 = vadd.f32 %v204, %v221
  %v223 = vpop.f32.mrf.mxu0
  %v224 = vadd.f32 %v206, %v223
  %225 = vdwg.mxu0
  %v226 = vmul.f32 %v222, 0.5
  %v227 = vmul.f32 %v224, 0.5
  %v228 = vld [vmem:[%s4] sm:$0x1]
  %v230 = vperm.slane %v228, 0
  %v232 = vadd.f32 %v226, %v230
  %v233 = vadd.f32 %v227, %v230
  %vm234 = vcmask 31744
  %235 = vst.msk [vmem:[%s5] sm:$0xff] %vm234, %v232
  %236 = vst.msk [vmem:[%s5 + $0x8] sm:$0xff] %vm234, %v233
  // Predicated region
  $region22: #{net_forward.7} parent=0 // pred_check
    _
  $region23: #{net_forward.7} parent=0 // pred_check_branch
    %238 = sbr.rel (0) target = $region25
  $region24: #{net_forward.7} parent=0 // pred_region
    _
  $region25: #{net_forward.7} parent=0 // pred_fallthru
    _
  // Predicated region
  $region26: #{net_forward.7} parent=0 // pred_check
    _
  $region27: #{net_forward.7} parent=0 // pred_check_branch
    %240 = sbr.rel (0) target = $region29
  $region28: #{net_forward.7} parent=0 // pred_region
    _
  $region29: #{net_forward.7} parent=0 // pred_fallthru
    _

</llo_original>
